<compile_context>
chip_gen: v7x
topology: tpu7x:2x2x1
jax: 0.10.0
libtpu: 0.0.40
codegen_flags: <defaults>
</compile_context>

<pallas_src>
import functools

import numpy as np
import jax
import jax.numpy as jnp
from jax import lax
from jax.experimental import pallas as pl
from jax.experimental.pallas import tpu as pltpu


# ----------------------------------------------------------------------------
# Pallas kernel
# ----------------------------------------------------------------------------
def _embed_pe_ln_kernel(ids_ref, emb_ref, pe_ref, g_ref, b_ref, o_ref, *,
                        scale, eps, inv_dm1):
    # ids: (R, 1) int32   emb: (V, D) f32   pe: (R, D) f32
    # g/b: (1, D) f32     out: (R, D) f32
    ids = ids_ref[...]
    R = ids.shape[0]
    V = emb_ref.shape[0]

    # Embedding gather as a one-hot matmul on the MXU (the rest of the kernel
    # is elementwise, so the MXU is otherwise idle).  sqrt(d_model) is folded
    # into the one-hot values, so the embedding scale costs zero extra VPU work.
    iota = lax.broadcasted_iota(jnp.int32, (R, V), 1)
    onehot = jnp.where(ids == iota, jnp.float32(scale), jnp.float32(0.0))

    # precision=HIGHEST keeps the f32 embedding values at (near-)f32 fidelity
    # through the MXU's bf16 multi-pass decomposition.
    t = jnp.dot(onehot, emb_ref[...],
                preferred_element_type=jnp.float32,
                precision=lax.Precision.HIGHEST)

    # PE rows are block-aligned with the activation rows -> plain VPU add
    # (no second gather / one-hot matmul needed).
    t = t + pe_ref[...]

    # PyTorch-style LayerNorm: unbiased (ddof=1) std and /(std + eps).
    mean = jnp.mean(t, axis=-1, keepdims=True)                     # (R, 1)
    diff = t - mean
    var = jnp.sum(diff * diff, axis=-1, keepdims=True) * inv_dm1   # Bessel
    # Per-row reciprocal (R values) instead of R*D element-wise divides.
    # approx=False keeps ~1e-3-level parity with the f32 reference.
    inv = pl.reciprocal(jnp.sqrt(var) + eps, approx=False)         # (R, 1)
    o_ref[...] = g_ref[...] * (diff * inv) + b_ref[...]


# ----------------------------------------------------------------------------
# Wrapper
# ----------------------------------------------------------------------------
def fused_embed_pe_layernorm(token_ids, emb_table, pe, gamma, beta, *,
                             eps=1e-6):
    """LayerNorm(Embeddings(token_ids) * sqrt(D) + PE[:S]) in one pallas_call.

    token_ids: (B, S) int32; emb_table: (V, D) f32; pe: (max_len, D) f32;
    gamma/beta: (D,) f32.  Returns (B, S, D) f32.
    """
    B, S = token_ids.shape
    V, D = emb_table.shape
    N = B * S
    scale = float(np.sqrt(D))

    ids = token_ids.reshape(N, 1).astype(jnp.int32)
    pe_s = pe[:S]

    if B == 1 or S % 8 == 0:
        # Grid over batch: each step handles one (S, D) row-block whose rows
        # line up with PE[:S], and the >=2 "parallel" steps can be sharded
        # across v7x's two TensorCores.
        grid = (B,)
        R = S
        pe_in = pe_s
    else:
        # Fallback when a per-batch row block would violate the (8,128)
        # sublane constraint: one fat block over all rows, PE tiled in the
        # wrapper (tiny, wrapper-side only).
        grid = (1,)
        R = N
        pe_in = jnp.tile(pe_s, (B, 1))

    kernel = functools.partial(_embed_pe_ln_kernel,
                               scale=scale, eps=eps, inv_dm1=1.0 / (D - 1))

    out = pl.pallas_call(
        kernel,
        out_shape=jax.ShapeDtypeStruct((N, D), jnp.float32),
        grid=grid,
        in_specs=[
            pl.BlockSpec((R, 1), lambda i: (i, 0)),   # token ids (row block)
            pl.BlockSpec((V, D), lambda i: (0, 0)),   # embedding table (constant block -> fetched once)
            pl.BlockSpec((R, D), lambda i: (0, 0)),   # PE rows (constant block)
            pl.BlockSpec((1, D), lambda i: (0, 0)),   # gamma
            pl.BlockSpec((1, D), lambda i: (0, 0)),   # beta
        ],
        out_specs=pl.BlockSpec((R, D), lambda i: (i, 0)),
        compiler_params=pltpu.CompilerParams(
            dimension_semantics=("parallel",)),
    )(ids, emb_table, pe_in, gamma.reshape(1, D), beta.reshape(1, D))

    return out.reshape(B, S, D)


# ----------------------------------------------------------------------------
# Parameter construction / glue
# ----------------------------------------------------------------------------
def make_positional_encoding(max_len, d_model):
    pos = np.arange(max_len, dtype=np.float32)[:, None]
    div = np.exp(np.arange(0, d_model, 2, dtype=np.float32)
                 * -(np.log(10000.0) / d_model))
    pe = np.zeros((max_len, d_model), dtype=np.float32)
    pe[:, 0::2] = np.sin(pos * div)
    pe[:, 1::2] = np.cos(pos * div)
    return jnp.asarray(pe)


def init_params(key, vocab_size, d_model, max_len=64):
    k1, k2, k3, k4 = jax.random.split(key, 4)
    return {
        "d_model": d_model,
        "src_emb": jax.random.normal(k1, (vocab_size, d_model), jnp.float32),
        "tgt_emb": jax.random.normal(k2, (vocab_size, d_model), jnp.float32),
        "pe": make_positional_encoding(max_len, d_model),
        "enc_gamma": jnp.ones((d_model,), jnp.float32),
        "enc_beta": jnp.zeros((d_model,), jnp.float32),
        "dec_gamma": jnp.ones((d_model,), jnp.float32),
        "dec_beta": jnp.zeros((d_model,), jnp.float32),
        # generator (ProjectionLayer) exists on the module but is NOT called by
        # Transformer.forward, so it is unused here.
        "proj_w": jax.random.normal(k3, (d_model, vocab_size), jnp.float32) * 0.02,
        "proj_b": jax.random.normal(k4, (vocab_size,), jnp.float32) * 0.02,
    }


def transformer_forward(params, src, tgt, src_mask, tgt_mask):
    # TODO(synk): the reference Transformer.forward passes arguments to decode()
    # in a swapped order (decode(encoder_output, src_mask, tgt, tgt_mask)),
    # which would feed a float tensor into nn.Embedding and crash in PyTorch;
    # we implement the conventional order decode(tgt, encoder_output, ...) here.
    #
    # With empty encoder/decoder layer ModuleLists the decoder never consumes
    # encoder_output, so the encoder pass is dead work and is elided; the
    # returned value is identical:
    #     LayerNorm(PE(tgt_embed(tgt)))   (dropout is identity in eval mode).
    del src, src_mask, tgt_mask
    return fused_embed_pe_layernorm(
        tgt, params["tgt_emb"], params["pe"],
        params["dec_gamma"], params["dec_beta"])


# ----------------------------------------------------------------------------
# Pure-JAX reference (mirrors the PyTorch math) for a correctness check
# ----------------------------------------------------------------------------
def _ref_forward(params, src, tgt):
    del src
    scale = np.sqrt(params["d_model"])
    t = (jnp.take(params["tgt_emb"], tgt, axis=0) * scale
         + params["pe"][: tgt.shape[1]])
    mean = t.mean(-1, keepdims=True)
    std = jnp.std(t, axis=-1, keepdims=True, ddof=1)
    return params["dec_gamma"] * (t - mean) / (std + 1e-6) + params["dec_beta"]


if __name__ == "__main__":
    B, S_SRC, S_TGT = 2, 8, 8
    VOCAB, D_MODEL = 64, 32

    key = jax.random.PRNGKey(0)
    kp, ks, kt = jax.random.split(key, 3)
    params = init_params(kp, VOCAB, D_MODEL, max_len=64)

    src = jax.random.randint(ks, (B, S_SRC), 0, VOCAB, dtype=jnp.int32)
    tgt = jax.random.randint(kt, (B, S_TGT), 0, VOCAB, dtype=jnp.int32)
    src_mask = jnp.ones((B, 1, S_SRC, S_SRC), jnp.float32)
    tgt_mask = jnp.ones((B, 1, S_TGT, S_TGT), jnp.float32)

    out = transformer_forward(params, src, tgt, src_mask, tgt_mask)
    out = jax.block_until_ready(out)

    ref = _ref_forward(params, src, tgt)
    # Tolerance 2e-3: the fused gather runs through the MXU's multi-pass f32
    # decomposition rather than an exact XLA gather.
    np.testing.assert_allclose(np.asarray(out), np.asarray(ref),
                               rtol=2e-3, atol=2e-3)
    assert out.shape == (B, S_TGT, D_MODEL)
    print("KERNEL_OK")
</pallas_src>

<mosaic_0001>
module attributes {stable_mosaic.version = 11 : i64} {
  func.func @_embed_pe_ln_kernel(%arg0: i32, %arg1: memref<8x1xi32, #tpu.memory_space<vmem>>, %arg2: memref<64x32xf32, #tpu.memory_space<vmem>>, %arg3: memref<8x32xf32, #tpu.memory_space<vmem>>, %arg4: memref<1x32xf32, #tpu.memory_space<vmem>>, %arg5: memref<1x32xf32, #tpu.memory_space<vmem>>, %arg6: memref<8x32xf32, #tpu.memory_space<vmem>>) attributes {dimension_semantics = [#tpu.dimension_semantics<parallel>], iteration_bounds = array<i64: 2>, scalar_prefetch = 0 : i64, scratch_operands = 0 : i64, tpu.core_type = #tpu.core_type<tc>, window_params = [{transform_indices = @transform_0, window_bounds = array<i64: 8, 1>}, {pipeline_mode = #tpu.pipeline_mode<synchronous>, transform_indices = @transform_1, window_bounds = array<i64: 64, 32>}, {pipeline_mode = #tpu.pipeline_mode<synchronous>, transform_indices = @transform_2, window_bounds = array<i64: 8, 32>}, {pipeline_mode = #tpu.pipeline_mode<synchronous>, transform_indices = @transform_3, window_bounds = array<i64: 1, 32>}, {pipeline_mode = #tpu.pipeline_mode<synchronous>, transform_indices = @transform_4, window_bounds = array<i64: 1, 32>}, {transform_indices = @transform_5, window_bounds = array<i64: 8, 32>}]} {
    %c0 = arith.constant 0 : index
    %c0_0 = arith.constant 0 : index
    %0 = vector.load %arg1[%c0, %c0_0] : memref<8x1xi32, #tpu.memory_space<vmem>>, vector<8x1xi32>
    %1 = tpu.iota {dimensions = array<i32: 1>} : vector<8x64xi32>
    %2 = vector.broadcast %0 : vector<8x1xi32> to vector<8x64xi32>
    %3 = arith.cmpi eq, %2, %1 : vector<8x64xi32>
    %cst = arith.constant 5.65685415 : f32
    %cst_1 = arith.constant 0.000000e+00 : f32
    %4 = vector.broadcast %cst : f32 to vector<8x64xf32>
    %5 = vector.broadcast %cst_1 : f32 to vector<8x64xf32>
    %6 = arith.select %3, %4, %5 : vector<8x64xi1>, vector<8x64xf32>
    %c0_2 = arith.constant 0 : index
    %c0_3 = arith.constant 0 : index
    %7 = vector.load %arg2[%c0_2, %c0_3] : memref<64x32xf32, #tpu.memory_space<vmem>>, vector<64x32xf32>
    %cst_4 = arith.constant dense<0.000000e+00> : vector<8x32xf32>
    %8 = tpu.matmul %6, %7, %cst_4 {dimension_numbers = #tpu.dot_dimension_numbers<[1], [0], [0], [1], [0, 0, 1, 1], [], []>, precision = #tpu.contract_precision<fp32>} : vector<8x64xf32>, vector<64x32xf32>, vector<8x32xf32> -> vector<8x32xf32>
    %c0_5 = arith.constant 0 : index
    %c0_6 = arith.constant 0 : index
    %9 = vector.load %arg3[%c0_5, %c0_6] : memref<8x32xf32, #tpu.memory_space<vmem>>, vector<8x32xf32>
    %10 = arith.addf %8, %9 : vector<8x32xf32>
    %cst_7 = arith.constant dense<0.000000e+00> : vector<8xf32>
    %11 = vector.multi_reduction <add>, %10, %cst_7 [1] : vector<8x32xf32> to vector<8xf32>
    %12 = vector.shape_cast %11 : vector<8xf32> to vector<8x1xf32>
    %cst_8 = arith.constant 3.200000e+01 : f32
    %13 = vector.broadcast %cst_8 : f32 to vector<8x1xf32>
    %14 = arith.divf %12, %13 : vector<8x1xf32>
    %15 = vector.broadcast %14 : vector<8x1xf32> to vector<8x32xf32>
    %16 = arith.subf %10, %15 : vector<8x32xf32>
    %17 = arith.mulf %16, %16 : vector<8x32xf32>
    %cst_9 = arith.constant dense<0.000000e+00> : vector<8xf32>
    %18 = vector.multi_reduction <add>, %17, %cst_9 [1] : vector<8x32xf32> to vector<8xf32>
    %19 = vector.shape_cast %18 : vector<8xf32> to vector<8x1xf32>
    %cst_10 = arith.constant 0.0322580636 : f32
    %20 = vector.broadcast %cst_10 : f32 to vector<8x1xf32>
    %21 = arith.mulf %19, %20 : vector<8x1xf32>
    %22 = math.sqrt %21 : vector<8x1xf32>
    %cst_11 = arith.constant 9.99999997E-7 : f32
    %23 = vector.broadcast %cst_11 : f32 to vector<8x1xf32>
    %24 = arith.addf %22, %23 : vector<8x1xf32>
    %25 = tpu.reciprocal %24 : vector<8x1xf32> -> vector<8x1xf32>
    %c0_12 = arith.constant 0 : index
    %c0_13 = arith.constant 0 : index
    %26 = vector.load %arg4[%c0_12, %c0_13] : memref<1x32xf32, #tpu.memory_space<vmem>>, vector<1x32xf32>
    %27 = vector.broadcast %25 : vector<8x1xf32> to vector<8x32xf32>
    %28 = arith.mulf %16, %27 : vector<8x32xf32>
    %29 = vector.broadcast %26 : vector<1x32xf32> to vector<8x32xf32>
    %30 = arith.mulf %29, %28 : vector<8x32xf32>
    %c0_14 = arith.constant 0 : index
    %c0_15 = arith.constant 0 : index
    %31 = vector.load %arg5[%c0_14, %c0_15] : memref<1x32xf32, #tpu.memory_space<vmem>>, vector<1x32xf32>
    %32 = vector.broadcast %31 : vector<1x32xf32> to vector<8x32xf32>
    %33 = arith.addf %30, %32 : vector<8x32xf32>
    %c0_16 = arith.constant 0 : index
    %c0_17 = arith.constant 0 : index
    %34 = vector.load %arg6[%c0_16, %c0_17] : memref<8x32xf32, #tpu.memory_space<vmem>>, vector<8x32xf32>
    tpu.vector_store %arg6[%c0_16, %c0_17], %33 {strides = array<i32>} : memref<8x32xf32, #tpu.memory_space<vmem>>, vector<8x32xf32>,
    return
  }
  func.func @transform_0(%arg0: i32) -> (i32, i32) {
    %c0_i32 = arith.constant 0 : i32
    %c0_i32_0 = arith.constant 0 : i32
    return %arg0, %c0_i32 : i32, i32
  }
  func.func @transform_1(%arg0: i32) -> (i32, i32) {
    %c0_i32 = arith.constant 0 : i32
    %c0_i32_0 = arith.constant 0 : i32
    %c0_i32_1 = arith.constant 0 : i32
    return %c0_i32, %c0_i32_0 : i32, i32
  }
  func.func @transform_2(%arg0: i32) -> (i32, i32) {
    %c0_i32 = arith.constant 0 : i32
    %c0_i32_0 = arith.constant 0 : i32
    %c0_i32_1 = arith.constant 0 : i32
    return %c0_i32, %c0_i32_0 : i32, i32
  }
  func.func @transform_3(%arg0: i32) -> (i32, i32) {
    %c0_i32 = arith.constant 0 : i32
    %c0_i32_0 = arith.constant 0 : i32
    %c0_i32_1 = arith.constant 0 : i32
    return %c0_i32, %c0_i32_0 : i32, i32
  }
  func.func @transform_4(%arg0: i32) -> (i32, i32) {
    %c0_i32 = arith.constant 0 : i32
    %c0_i32_0 = arith.constant 0 : i32
    %c0_i32_1 = arith.constant 0 : i32
    return %c0_i32, %c0_i32_0 : i32, i32
  }
  func.func @transform_5(%arg0: i32) -> (i32, i32) {
    %c0_i32 = arith.constant 0 : i32
    %c0_i32_0 = arith.constant 0 : i32
    return %arg0, %c0_i32 : i32, i32
  }
}

</mosaic_0001>

<llo_original>
// kernel: tpu_custom_call.1
$region0: #{tpu_custom_call.1}
  #allocation0 [shape = 'u32[]', space=smem, size = 0x4, offset = 0x4, fixed_abs, tag = 'smem constant byte address 0x4 - core index']
  #allocation1 [shape = 'u32[144,128]{1,0:T(1,128)}', space=vmem, size = 0x12000, scoped, tag = 'internal scratch']
  %s0 = inlined_call_operand.vmem [shape: s32[16,1], index: 0, kind: input, shape index: {}]
  %s1 = inlined_call_operand.vmem [shape: f32[64,32], index: 1, kind: input, shape index: {}]
  %s2 = inlined_call_operand.vmem [shape: f32[8,32], index: 2, kind: input, shape index: {}]
  %s3 = inlined_call_operand.vmem [shape: f32[1,32], index: 3, kind: input, shape index: {}]
  %s4 = inlined_call_operand.vmem [shape: f32[1,32], index: 4, kind: input, shape index: {}]
  %s5 = inlined_call_operand.hbm [shape: f32[16,32], index: 5, kind: output, shape index: {}]
  %s6 = sld [smem:[#allocation0]]
  $region53: #{tpu_custom_call.1} parent=0
    _
  %s8 = ssub.s32 1, %s6
  %s9 = scalar_select 0, %s8, %s6
  $region1: #{tpu_custom_call.1} parent=0
    #allocation2 [shape = 'u8[8192]{0}', space=vmem, size = 0x2000, scoped, tag = 'output window, operand 0']
    #allocation3 [shape = 's32[2]{0}', space=sflag, size = 0x8, scoped, tag = 'scoped memory for tpu_custom_call.1']
    %10 = vsyncpa [#allocation3], 0
    %s11 = scalar_lea.sflag [#allocation3], 1
    %12 = vsyncpa %s11, 0
    loop: start=0, step=1, limit=4
    $region2: #{tpu_custom_call.1} parent=1 // loop_pre_header
      _
    $region3: #{tpu_custom_call.1} parent=1 // loop_header
      %s14 = sphi 0, %s18
      %p15 = scmp.ge.s32.totalorder %s14, 4
      %s24 = sphi 0, %s26
      %s27 = sphi 0, %s24
      %s28 = sphi 0, %s27
      %s44 = sphi 0, %s28
      %s48 = sphi 0, %s48
      %s50 = sphi 0, %s48
      %s51 = sphi 0, %s50
      %s65 = sphi 0, %s51
      %s69 = sphi 0, %s69
      %s71 = sphi 0, %s69
      %s72 = sphi 0, %s71
      %s86 = sphi 0, %s72
      %s90 = sphi 0, %s90
      %s92 = sphi 0, %s90
      %s93 = sphi 0, %s92
      %s107 = sphi 0, %s93
      %s111 = sphi 0, %s111
      %s113 = sphi 0, %s111
      %s114 = sphi 0, %s113
      %s128 = sphi 0, %s114
      %s134 = sphi 0, %s136
      %s137 = sphi 0, %s134
      %s138 = sphi 0, %s137
      %s154 = sphi 0, %s138
    $region4: #{tpu_custom_call.1} parent=1 // loop_header_branch
      %17 = sbr.rel (%p15) target = $region8
    $region5: #{tpu_custom_call.1} parent=1 // loop_body
      %s19 = ssub.s32 %s14, 1
      %s20 = ssub.s32 %s14, 2
      %s21 = sadd.s32 %s14, 1
      %s22 = ssub.s32 %s14, %s21
      %p23 = scmp.eq.s32.totalorder %s22, 0
      %s25 = sadd.s32 %s24, 1
      %s26 = scalar_select %p23, %s24, %s25
      %p29 = pneg %p23
      %p30 = scmp.eq.s32.totalorder %s14, 1
      %p31 = por %p29, %p30
      %p32 = scmp.ne.s32.totalorder %s24, %s27
      %p33 = scmp.eq.s32.totalorder %s14, 0
      %p34 = por %p32, %p33
      %p35 = scmp.ne.s32.totalorder %s24, %s27
      %p36 = scmp.eq.s32.totalorder %s19, 1
      %p37 = por %p35, %p36
      %p38 = scmp.ne.s32.totalorder %s27, %s28
      %p39 = scmp.eq.s32.totalorder %s19, 0
      %p40 = por %p38, %p39
      %p41 = scmp.ne.s32.totalorder %s27, %s28
      %p42 = scmp.eq.s32.totalorder %s20, 1
      %p43 = por %p41, %p42
      %p45 = scmp.ne.s32.totalorder %s28, %s44
      %p46 = scmp.eq.s32.totalorder %s20, 0
      %p47 = por %p45, %p46
      %s49 = sadd.s32 %s48, 1
      %p52 = scmp.eq.s32.totalorder %s14, 1
      %p53 = scmp.ne.s32.totalorder %s48, %s50
      %p54 = scmp.eq.s32.totalorder %s14, 0
      %p55 = por %p53, %p54
      %p56 = scmp.ne.s32.totalorder %s48, %s50
      %p57 = scmp.eq.s32.totalorder %s19, 1
      %p58 = por %p56, %p57
      %p59 = scmp.ne.s32.totalorder %s50, %s51
      %p60 = scmp.eq.s32.totalorder %s19, 0
      %p61 = por %p59, %p60
      %p62 = scmp.ne.s32.totalorder %s50, %s51
      %p63 = scmp.eq.s32.totalorder %s20, 1
      %p64 = por %p62, %p63
      %p66 = scmp.ne.s32.totalorder %s51, %s65
      %p67 = scmp.eq.s32.totalorder %s20, 0
      %p68 = por %p66, %p67
      %s70 = sadd.s32 %s69, 1
      %p73 = scmp.eq.s32.totalorder %s14, 1
      %p74 = scmp.ne.s32.totalorder %s69, %s71
      %p75 = scmp.eq.s32.totalorder %s14, 0
      %p76 = por %p74, %p75
      %p77 = scmp.ne.s32.totalorder %s69, %s71
      %p78 = scmp.eq.s32.totalorder %s19, 1
      %p79 = por %p77, %p78
      %p80 = scmp.ne.s32.totalorder %s71, %s72
      %p81 = scmp.eq.s32.totalorder %s19, 0
      %p82 = por %p80, %p81
      %p83 = scmp.ne.s32.totalorder %s71, %s72
      %p84 = scmp.eq.s32.totalorder %s20, 1
      %p85 = por %p83, %p84
      %p87 = scmp.ne.s32.totalorder %s72, %s86
      %p88 = scmp.eq.s32.totalorder %s20, 0
      %p89 = por %p87, %p88
      %s91 = sadd.s32 %s90, 1
      %p94 = scmp.eq.s32.totalorder %s14, 1
      %p95 = scmp.ne.s32.totalorder %s90, %s92
      %p96 = scmp.eq.s32.totalorder %s14, 0
      %p97 = por %p95, %p96
      %p98 = scmp.ne.s32.totalorder %s90, %s92
      %p99 = scmp.eq.s32.totalorder %s19, 1
      %p100 = por %p98, %p99
      %p101 = scmp.ne.s32.totalorder %s92, %s93
      %p102 = scmp.eq.s32.totalorder %s19, 0
      %p103 = por %p101, %p102
      %p104 = scmp.ne.s32.totalorder %s92, %s93
      %p105 = scmp.eq.s32.totalorder %s20, 1
      %p106 = por %p104, %p105
      %p108 = scmp.ne.s32.totalorder %s93, %s107
      %p109 = scmp.eq.s32.totalorder %s20, 0
      %p110 = por %p108, %p109
      %s112 = sadd.s32 %s111, 1
      %p115 = scmp.eq.s32.totalorder %s14, 1
      %p116 = scmp.ne.s32.totalorder %s111, %s113
      %p117 = scmp.eq.s32.totalorder %s14, 0
      %p118 = por %p116, %p117
      %p119 = scmp.ne.s32.totalorder %s111, %s113
      %p120 = scmp.eq.s32.totalorder %s19, 1
      %p121 = por %p119, %p120
      %p122 = scmp.ne.s32.totalorder %s113, %s114
      %p123 = scmp.eq.s32.totalorder %s19, 0
      %p124 = por %p122, %p123
      %p125 = scmp.ne.s32.totalorder %s113, %s114
      %p126 = scmp.eq.s32.totalorder %s20, 1
      %p127 = por %p125, %p126
      %p129 = scmp.ne.s32.totalorder %s114, %s128
      %p130 = scmp.eq.s32.totalorder %s20, 0
      %p131 = por %p129, %p130
      %s132 = ssub.s32 %s14, %s21
      %p133 = scmp.eq.s32.totalorder %s132, 0
      %s135 = sadd.s32 %s134, 1
      %s136 = scalar_select %p133, %s134, %s135
      %p139 = pneg %p133
      %p140 = scmp.eq.s32.totalorder %s14, 1
      %p141 = por %p139, %p140
      %p142 = scmp.ne.s32.totalorder %s134, %s137
      %p143 = scmp.eq.s32.totalorder %s14, 0
      %p144 = por %p142, %p143
      %p145 = scmp.ne.s32.totalorder %s134, %s137
      %p146 = scmp.eq.s32.totalorder %s19, 1
      %p147 = por %p145, %p146
      %p148 = scmp.ne.s32.totalorder %s137, %s138
      %p149 = scmp.eq.s32.totalorder %s19, 0
      %p150 = por %p148, %p149
      %p151 = scmp.ne.s32.totalorder %s137, %s138
      %p152 = scmp.eq.s32.totalorder %s20, 1
      %p153 = por %p151, %p152
      %p155 = scmp.ne.s32.totalorder %s138, %s154
      %p156 = scmp.eq.s32.totalorder %s20, 0
      %p157 = por %p155, %p156
      %p158 = scmp.le.s32.totalorder 1, %s14
      %p159 = scmp.lt.s32.totalorder %s14, 3
      %p160 = pnand %p158, %p159
      %p161 = pneg %p160
      // Predicated region
      $region9: #{tpu_custom_call.1} parent=5 // pred_check
        _
      $region10: #{tpu_custom_call.1} parent=5 // pred_check_branch
        %163 = sbr.rel (%p160) target = $region12
      $region11: #{tpu_custom_call.1} parent=5 // pred_region
        %s164 = ssub.s32 %s14, 1
        // Predicated region
        $region13: #{tpu_custom_call.1} parent=11 // pred_check
          %p165 = pneg %p61
        $region14: #{tpu_custom_call.1} parent=11 // pred_check_branch
          %167 = sbr.rel (%p165) target = $region16
        $region15: #{tpu_custom_call.1} parent=11 // pred_region
          _
        $region16: #{tpu_custom_call.1} parent=11 // pred_fallthru
          _
        // Predicated region
        $region17: #{tpu_custom_call.1} parent=11 // pred_check
          %p168 = pneg %p82
        $region18: #{tpu_custom_call.1} parent=11 // pred_check_branch
          %170 = sbr.rel (%p168) target = $region20
        $region19: #{tpu_custom_call.1} parent=11 // pred_region
          _
        $region20: #{tpu_custom_call.1} parent=11 // pred_fallthru
          _
        // Predicated region
        $region21: #{tpu_custom_call.1} parent=11 // pred_check
          %p171 = pneg %p103
        $region22: #{tpu_custom_call.1} parent=11 // pred_check_branch
          %173 = sbr.rel (%p171) target = $region24
        $region23: #{tpu_custom_call.1} parent=11 // pred_region
          _
        $region24: #{tpu_custom_call.1} parent=11 // pred_fallthru
          _
        // Predicated region
        $region25: #{tpu_custom_call.1} parent=11 // pred_check
          %p174 = pneg %p124
        $region26: #{tpu_custom_call.1} parent=11 // pred_check_branch
          %176 = sbr.rel (%p174) target = $region28
        $region27: #{tpu_custom_call.1} parent=11 // pred_region
          _
        $region28: #{tpu_custom_call.1} parent=11 // pred_fallthru
          _
      $region12: #{tpu_custom_call.1} parent=5 // pred_fallthru
        _
      %p177 = scmp.lt.s32.totalorder %s14, 2
      // Predicated region
      $region29: #{tpu_custom_call.1} parent=5 // pred_check
        %p178 = pneg %p177
      $region30: #{tpu_custom_call.1} parent=5 // pred_check_branch
        %180 = sbr.rel (%p178) target = $region32
      $region31: #{tpu_custom_call.1} parent=5 // pred_region
        // Predicated region
        $region33: #{tpu_custom_call.1} parent=31 // pred_check
          %p181 = pneg %p34
        $region34: #{tpu_custom_call.1} parent=31 // pred_check_branch
          %183 = sbr.rel (%p181) target = $region36
        $region35: #{tpu_custom_call.1} parent=31 // pred_region
          %p184 = scmp.lt.s32.totalorder %s14, 1
          %s185 = scalar_select %p184, %s14, 1
          %s186 = smul.addr %s185, 8
          %s187 = scalar_lea.vmem %s0, %s186
        $region36: #{tpu_custom_call.1} parent=31 // pred_fallthru
          _
      $region32: #{tpu_custom_call.1} parent=5 // pred_fallthru
        _
      %p188 = scmp.le.s32.totalorder 1, %s14
      %p189 = scmp.lt.s32.totalorder %s14, 3
      %p190 = pnand %p188, %p189
      %p191 = pneg %p190
      // Predicated region
      $region37: #{tpu_custom_call.1} parent=5 // pred_check
        _
      $region38: #{tpu_custom_call.1} parent=5 // pred_check_branch
        %193 = sbr.rel (%p190) target = $region40
      $region39: #{tpu_custom_call.1} parent=5 // pred_region
        %s194 = ssub.s32 %s14, 1
        %p195 = scmp.lt.s32.totalorder %s19, 1
        %s196 = scalar_select %p195, %s19, 1
        %s197 = smul.addr %s196, 8
        %s198 = scalar_lea.vmem %s0, %s197
        %p199 = pneg %p40
        %p200 = pneg %p37
        %p201 = pneg %p61
        %p202 = pneg %p58
        %p203 = pneg %p82
        %p204 = pneg %p79
        %p205 = pneg %p103
        %p206 = pneg %p100
        %p207 = pneg %p124
        %p208 = pneg %p121
        %p209 = pneg %p150
        %p210 = pneg %p147
        %s211 = sand.u32 %s137, 1
        %s212 = scalar_lea.sflag [#allocation3], %s211
        %s213 = sand.u32 %s137, 1
        %s214 = smul.addr %s213, 8
        %s215 = scalar_lea.vmem [#allocation2], %s214
        %p216 = scmp.lt.s32.totalorder %s19, 1
        %s217 = scalar_select %p216, %s19, 1
        %s218 = smul.addr %s217, 8
        %s219 = scalar_lea.vmem %s0, %s218
        %v220 = vld [vmem:[%s219] sm:$0xff]
        %v221 = vlaneseq
        %v222 = vand.u32 %v221, 127
        %223 = vset.pattern.permute.xlu0 0
        %224 = vperm.xlu0 %223, %v220
        %v225 = vpop.permute.xlu0 %224
        %vm226 = vcmp.eq.s32.totalorder %v225, %v222
        %v227 = vsel %vm226, 5.656854, 0.0
        %v228 = vld [vmem:[%s1] sm:$0xff]
        %v229 = vld [vmem:[%s1 + $0x8] sm:$0xff]
        %v230 = vld [vmem:[%s1 + $0x10] sm:$0xff]
        %v231 = vld [vmem:[%s1 + $0x18] sm:$0xff]
        %v232 = vld [vmem:[%s1 + $0x20] sm:$0xff]
        %v233 = vld [vmem:[%s1 + $0x28] sm:$0xff]
        %v234 = vld [vmem:[%s1 + $0x30] sm:$0xff]
        %v235 = vld [vmem:[%s1 + $0x38] sm:$0xff]
        %v236 = vld [vmem:[%s2] sm:$0xff]
        %vm237 = vcmask 523264
        %v239 = vsel %vm237, %v227, 0
        %241 = vmatprep.subr.mxu0 0.0
        %v242 = vand.u32 %v228, 4294901760
        %243 = vmatpush1.msra.mxu0 %v242
        %244 = vmatprep.subr.mxu0 0.0
        %v245 = vand.u32 %v229, 4294901760
        %246 = vmatpush1.msra.mxu0 %v245
        %247 = vmatprep.subr.mxu0 0.0
        %v248 = vand.u32 %v230, 4294901760
        %249 = vmatpush1.msra.mxu0 %v248
        %250 = vmatprep.subr.mxu0 0.0
        %v251 = vand.u32 %v231, 4294901760
        %252 = vmatpush1.msra.mxu0 %v251
        %253 = vmatprep.subr.mxu0 0.0
        %v254 = vand.u32 %v232, 4294901760
        %255 = vmatpush1.msra.mxu0 %v254
        %256 = vmatprep.subr.mxu0 0.0
        %v257 = vand.u32 %v233, 4294901760
        %258 = vmatpush1.msra.mxu0 %v257
        %259 = vmatprep.subr.mxu0 0.0
        %v260 = vand.u32 %v234, 4294901760
        %261 = vmatpush1.msra.mxu0 %v260
        %262 = vmatprep.subr.mxu0 0.0
        %v263 = vand.u32 %v235, 4294901760
        %264 = vmatpush1.msra.mxu0 %v263
        %265 = vmatprep.subr.mxu0 0.0
        %266 = vmatpush1.msra.mxu0 0.0
        %267 = vmatprep.subr.mxu0 0.0
        %268 = vmatpush1.msra.mxu0 0.0
        %269 = vmatprep.subr.mxu0 0.0
        %270 = vmatpush1.msra.mxu0 0.0
        %271 = vmatprep.subr.mxu0 0.0
        %272 = vmatpush1.msra.mxu0 0.0
        %273 = vmatprep.subr.mxu0 0.0
        %274 = vmatpush1.msra.mxu0 0.0
        %275 = vmatprep.subr.mxu0 0.0
        %276 = vmatpush1.msra.mxu0 0.0
        %277 = vmatprep.subr.mxu0 0.0
        %278 = vmatpush1.msra.mxu0 0.0
        %279 = vmatprep.subr.mxu0 0.0
        %280 = vmatpush1.msra.mxu0 0.0
        %281 = vmatprep.subr.mxu0 0.0
        %282 = vmatpush1.msra.mxu0 0.0
        %283 = vmatprep.subr.mxu0 0.0
        %284 = vmatpush1.msra.mxu0 0.0
        %285 = vmatprep.subr.mxu0 0.0
        %286 = vmatpush1.msra.mxu0 0.0
        %287 = vmatprep.subr.mxu0 0.0
        %288 = vmatpush1.msra.mxu0 0.0
        %289 = vmatprep.subr.mxu0 0.0
        %290 = vmatpush1.msra.mxu0 0.0
        %291 = vmatprep.subr.mxu0 0.0
        %292 = vmatpush1.msra.mxu0 0.0
        %293 = vmatprep.subr.mxu0 0.0
        %294 = vmatpush1.msra.mxu0 0.0
        %295 = vmatprep.subr.mxu0 0.0
        %296 = vmatpush1.msra.mxu0 0.0
        %297 = vmatprep.subr.mxu0 0.0
        %298 = vmatpush1.msra.mxu0 0.0
        %299 = vmatprep.subr.mxu0 0.0
        %300 = vmatpush1.msra.mxu0 0.0
        %301 = vmatprep.subr.mxu0 0.0
        %302 = vmatpush1.msra.mxu0 0.0
        %303 = vmatprep.subr.mxu0 0.0
        %304 = vmatpush1.msra.mxu0 0.0
        %305 = vmatprep.subr.mxu0 0.0
        %306 = vmatpush1.msra.mxu0 0.0
        %307 = vmatprep.subr.mxu0 0.0
        %308 = vmatpush1.msra.mxu0 0.0
        %309 = vmatprep.subr.mxu0 0.0
        %310 = vmatpush1.msra.mxu0 0.0
        %311 = vmatprep.subr.mxu0 0.0
        %312 = vmatpush1.msra.mxu0 0.0
        %313 = vmatprep.mubr.f32.mxu0 0.0
        %v314 = vand.u32 %v239, 4294901760
        %v315 = vsub.f32 %v239, %v314
        %v316 = vand.u32 %v315, 4294901760
        %v317 = vsub.f32 %v315, %v316
        %v318 = vand.u32 %v317, 4294901760
        %319 = vmatmul.mubr.f32.gmra.mrb[0].mxu0 %v318
        %v320 = vpop.f32.mrb[0].mxu0
        %v321 = vadd.f32 %v236, %v320
        %v322 = vpop.f32.mrb[0].mxu0
        %323 = vdwg.mxu0
        %324 = vmatprep.subr.mxu0 0.0
        %v325 = vand.u32 %v228, 4294901760
        %v326 = vsub.f32 %v228, %v325
        %v327 = vand.u32 %v326, 4294901760
        %v328 = vsub.f32 %v326, %v327
        %v329 = vand.u32 %v328, 4294901760
        %330 = vmatpush1.msra.mxu0 %v329
        %331 = vmatprep.subr.mxu0 0.0
        %v332 = vand.u32 %v229, 4294901760
        %v333 = vsub.f32 %v229, %v332
        %v334 = vand.u32 %v333, 4294901760
        %v335 = vsub.f32 %v333, %v334
        %v336 = vand.u32 %v335, 4294901760
        %337 = vmatpush1.msra.mxu0 %v336
        %338 = vmatprep.subr.mxu0 0.0
        %v339 = vand.u32 %v230, 4294901760
        %v340 = vsub.f32 %v230, %v339
        %v341 = vand.u32 %v340, 4294901760
        %v342 = vsub.f32 %v340, %v341
        %v343 = vand.u32 %v342, 4294901760
        %344 = vmatpush1.msra.mxu0 %v343
        %345 = vmatprep.subr.mxu0 0.0
        %v346 = vand.u32 %v231, 4294901760
        %v347 = vsub.f32 %v231, %v346
        %v348 = vand.u32 %v347, 4294901760
        %v349 = vsub.f32 %v347, %v348
        %v350 = vand.u32 %v349, 4294901760
        %351 = vmatpush1.msra.mxu0 %v350
        %352 = vmatprep.subr.mxu0 0.0
        %v353 = vand.u32 %v232, 4294901760
        %v354 = vsub.f32 %v232, %v353
        %v355 = vand.u32 %v354, 4294901760
        %v356 = vsub.f32 %v354, %v355
        %v357 = vand.u32 %v356, 4294901760
        %358 = vmatpush1.msra.mxu0 %v357
        %359 = vmatprep.subr.mxu0 0.0
        %v360 = vand.u32 %v233, 4294901760
        %v361 = vsub.f32 %v233, %v360
        %v362 = vand.u32 %v361, 4294901760
        %v363 = vsub.f32 %v361, %v362
        %v364 = vand.u32 %v363, 4294901760
        %365 = vmatpush1.msra.mxu0 %v364
        %366 = vmatprep.subr.mxu0 0.0
        %v367 = vand.u32 %v234, 4294901760
        %v368 = vsub.f32 %v234, %v367
        %v369 = vand.u32 %v368, 4294901760
        %v370 = vsub.f32 %v368, %v369
        %v371 = vand.u32 %v370, 4294901760
        %372 = vmatpush1.msra.mxu0 %v371
        %373 = vmatprep.subr.mxu0 0.0
        %v374 = vand.u32 %v235, 4294901760
        %v375 = vsub.f32 %v235, %v374
        %v376 = vand.u32 %v375, 4294901760
        %v377 = vsub.f32 %v375, %v376
        %v378 = vand.u32 %v377, 4294901760
        %379 = vmatpush1.msra.mxu0 %v378
        %380 = vmatprep.subr.mxu0 0.0
        %381 = vmatpush1.msra.mxu0 0.0
        %382 = vmatprep.subr.mxu0 0.0
        %383 = vmatpush1.msra.mxu0 0.0
        %384 = vmatprep.subr.mxu0 0.0
        %385 = vmatpush1.msra.mxu0 0.0
        %386 = vmatprep.subr.mxu0 0.0
        %387 = vmatpush1.msra.mxu0 0.0
        %388 = vmatprep.subr.mxu0 0.0
        %389 = vmatpush1.msra.mxu0 0.0
        %390 = vmatprep.subr.mxu0 0.0
        %391 = vmatpush1.msra.mxu0 0.0
        %392 = vmatprep.subr.mxu0 0.0
        %393 = vmatpush1.msra.mxu0 0.0
        %394 = vmatprep.subr.mxu0 0.0
        %395 = vmatpush1.msra.mxu0 0.0
        %396 = vmatprep.subr.mxu0 0.0
        %397 = vmatpush1.msra.mxu0 0.0
        %398 = vmatprep.subr.mxu0 0.0
        %399 = vmatpush1.msra.mxu0 0.0
        %400 = vmatprep.subr.mxu0 0.0
        %401 = vmatpush1.msra.mxu0 0.0
        %402 = vmatprep.subr.mxu0 0.0
        %403 = vmatpush1.msra.mxu0 0.0
        %404 = vmatprep.subr.mxu0 0.0
        %405 = vmatpush1.msra.mxu0 0.0
        %406 = vmatprep.subr.mxu0 0.0
        %407 = vmatpush1.msra.mxu0 0.0
        %408 = vmatprep.subr.mxu0 0.0
        %409 = vmatpush1.msra.mxu0 0.0
        %410 = vmatprep.subr.mxu0 0.0
        %411 = vmatpush1.msra.mxu0 0.0
        %412 = vmatprep.subr.mxu0 0.0
        %413 = vmatpush1.msra.mxu0 0.0
        %414 = vmatprep.subr.mxu0 0.0
        %415 = vmatpush1.msra.mxu0 0.0
        %416 = vmatprep.subr.mxu0 0.0
        %417 = vmatpush1.msra.mxu0 0.0
        %418 = vmatprep.subr.mxu0 0.0
        %419 = vmatpush1.msra.mxu0 0.0
        %420 = vmatprep.subr.mxu0 0.0
        %421 = vmatpush1.msra.mxu0 0.0
        %422 = vmatprep.subr.mxu0 0.0
        %423 = vmatpush1.msra.mxu0 0.0
        %424 = vmatprep.subr.mxu0 0.0
        %425 = vmatpush1.msra.mxu0 0.0
        %426 = vmatprep.subr.mxu0 0.0
        %427 = vmatpush1.msra.mxu0 0.0
        %428 = vmatprep.mubr.f32.mxu0 0.0
        %v429 = vand.u32 %v239, 4294901760
        %430 = vmatmul.mubr.f32.gmra.mrb[0].mxu0 %v429
        %v431 = vpop.f32.mrb[0].mxu0
        %v432 = vadd.f32 %v321, %v431
        %v433 = vpop.f32.mrb[0].mxu0
        %434 = vdwg.mxu0
        %435 = vmatprep.subr.mxu0 0.0
        %v436 = vand.u32 %v228, 4294901760
        %v437 = vsub.f32 %v228, %v436
        %438 = vmatpush1.msra.mxu0 %v437
        %439 = vmatprep.subr.mxu0 0.0
        %v440 = vand.u32 %v229, 4294901760
        %v441 = vsub.f32 %v229, %v440
        %442 = vmatpush1.msra.mxu0 %v441
        %443 = vmatprep.subr.mxu0 0.0
        %v444 = vand.u32 %v230, 4294901760
        %v445 = vsub.f32 %v230, %v444
        %446 = vmatpush1.msra.mxu0 %v445
        %447 = vmatprep.subr.mxu0 0.0
        %v448 = vand.u32 %v231, 4294901760
        %v449 = vsub.f32 %v231, %v448
        %450 = vmatpush1.msra.mxu0 %v449
        %451 = vmatprep.subr.mxu0 0.0
        %v452 = vand.u32 %v232, 4294901760
        %v453 = vsub.f32 %v232, %v452
        %454 = vmatpush1.msra.mxu0 %v453
        %455 = vmatprep.subr.mxu0 0.0
        %v456 = vand.u32 %v233, 4294901760
        %v457 = vsub.f32 %v233, %v456
        %458 = vmatpush1.msra.mxu0 %v457
        %459 = vmatprep.subr.mxu0 0.0
        %v460 = vand.u32 %v234, 4294901760
        %v461 = vsub.f32 %v234, %v460
        %462 = vmatpush1.msra.mxu0 %v461
        %463 = vmatprep.subr.mxu0 0.0
        %v464 = vand.u32 %v235, 4294901760
        %v465 = vsub.f32 %v235, %v464
        %466 = vmatpush1.msra.mxu0 %v465
        %467 = vmatprep.subr.mxu0 0.0
        %468 = vmatpush1.msra.mxu0 0.0
        %469 = vmatprep.subr.mxu0 0.0
        %470 = vmatpush1.msra.mxu0 0.0
        %471 = vmatprep.subr.mxu0 0.0
        %472 = vmatpush1.msra.mxu0 0.0
        %473 = vmatprep.subr.mxu0 0.0
        %474 = vmatpush1.msra.mxu0 0.0
        %475 = vmatprep.subr.mxu0 0.0
        %476 = vmatpush1.msra.mxu0 0.0
        %477 = vmatprep.subr.mxu0 0.0
        %478 = vmatpush1.msra.mxu0 0.0
        %479 = vmatprep.subr.mxu0 0.0
        %480 = vmatpush1.msra.mxu0 0.0
        %481 = vmatprep.subr.mxu0 0.0
        %482 = vmatpush1.msra.mxu0 0.0
        %483 = vmatprep.subr.mxu0 0.0
        %484 = vmatpush1.msra.mxu0 0.0
        %485 = vmatprep.subr.mxu0 0.0
        %486 = vmatpush1.msra.mxu0 0.0
        %487 = vmatprep.subr.mxu0 0.0
        %488 = vmatpush1.msra.mxu0 0.0
        %489 = vmatprep.subr.mxu0 0.0
        %490 = vmatpush1.msra.mxu0 0.0
        %491 = vmatprep.subr.mxu0 0.0
        %492 = vmatpush1.msra.mxu0 0.0
        %493 = vmatprep.subr.mxu0 0.0
        %494 = vmatpush1.msra.mxu0 0.0
        %495 = vmatprep.subr.mxu0 0.0
        %496 = vmatpush1.msra.mxu0 0.0
        %497 = vmatprep.subr.mxu0 0.0
        %498 = vmatpush1.msra.mxu0 0.0
        %499 = vmatprep.subr.mxu0 0.0
        %500 = vmatpush1.msra.mxu0 0.0
        %501 = vmatprep.subr.mxu0 0.0
        %502 = vmatpush1.msra.mxu0 0.0
        %503 = vmatprep.subr.mxu0 0.0
        %504 = vmatpush1.msra.mxu0 0.0
        %505 = vmatprep.subr.mxu0 0.0
        %506 = vmatpush1.msra.mxu0 0.0
        %507 = vmatprep.subr.mxu0 0.0
        %508 = vmatpush1.msra.mxu0 0.0
        %509 = vmatprep.subr.mxu0 0.0
        %510 = vmatpush1.msra.mxu0 0.0
        %511 = vmatprep.subr.mxu0 0.0
        %512 = vmatpush1.msra.mxu0 0.0
        %513 = vmatprep.subr.mxu0 0.0
        %514 = vmatpush1.msra.mxu0 0.0
        %515 = vmatprep.mubr.f32.mxu0 0.0
        %v516 = vand.u32 %v239, 4294901760
        %v517 = vsub.f32 %v239, %v516
        %518 = vmatmul.mubr.f32.gmra.mrb[0].mxu0 %v517
        %v519 = vpop.f32.mrb[0].mxu0
        %v520 = vadd.f32 %v432, %v519
        %v521 = vpop.f32.mrb[0].mxu0
        %522 = vdwg.mxu0
        %523 = vmatprep.subr.mxu0 0.0
        %v524 = vand.u32 %v228, 4294901760
        %525 = vmatpush1.msra.mxu0 %v524
        %526 = vmatprep.subr.mxu0 0.0
        %v527 = vand.u32 %v229, 4294901760
        %528 = vmatpush1.msra.mxu0 %v527
        %529 = vmatprep.subr.mxu0 0.0
        %v530 = vand.u32 %v230, 4294901760
        %531 = vmatpush1.msra.mxu0 %v530
        %532 = vmatprep.subr.mxu0 0.0
        %v533 = vand.u32 %v231, 4294901760
        %534 = vmatpush1.msra.mxu0 %v533
        %535 = vmatprep.subr.mxu0 0.0
        %v536 = vand.u32 %v232, 4294901760
        %537 = vmatpush1.msra.mxu0 %v536
        %538 = vmatprep.subr.mxu0 0.0
        %v539 = vand.u32 %v233, 4294901760
        %540 = vmatpush1.msra.mxu0 %v539
        %541 = vmatprep.subr.mxu0 0.0
        %v542 = vand.u32 %v234, 4294901760
        %543 = vmatpush1.msra.mxu0 %v542
        %544 = vmatprep.subr.mxu0 0.0
        %v545 = vand.u32 %v235, 4294901760
        %546 = vmatpush1.msra.mxu0 %v545
        %547 = vmatprep.subr.mxu0 0.0
        %548 = vmatpush1.msra.mxu0 0.0
        %549 = vmatprep.subr.mxu0 0.0
        %550 = vmatpush1.msra.mxu0 0.0
        %551 = vmatprep.subr.mxu0 0.0
        %552 = vmatpush1.msra.mxu0 0.0
        %553 = vmatprep.subr.mxu0 0.0
        %554 = vmatpush1.msra.mxu0 0.0
        %555 = vmatprep.subr.mxu0 0.0
        %556 = vmatpush1.msra.mxu0 0.0
        %557 = vmatprep.subr.mxu0 0.0
        %558 = vmatpush1.msra.mxu0 0.0
        %559 = vmatprep.subr.mxu0 0.0
        %560 = vmatpush1.msra.mxu0 0.0
        %561 = vmatprep.subr.mxu0 0.0
        %562 = vmatpush1.msra.mxu0 0.0
        %563 = vmatprep.subr.mxu0 0.0
        %564 = vmatpush1.msra.mxu0 0.0
        %565 = vmatprep.subr.mxu0 0.0
        %566 = vmatpush1.msra.mxu0 0.0
        %567 = vmatprep.subr.mxu0 0.0
        %568 = vmatpush1.msra.mxu0 0.0
        %569 = vmatprep.subr.mxu0 0.0
        %570 = vmatpush1.msra.mxu0 0.0
        %571 = vmatprep.subr.mxu0 0.0
        %572 = vmatpush1.msra.mxu0 0.0
        %573 = vmatprep.subr.mxu0 0.0
        %574 = vmatpush1.msra.mxu0 0.0
        %575 = vmatprep.subr.mxu0 0.0
        %576 = vmatpush1.msra.mxu0 0.0
        %577 = vmatprep.subr.mxu0 0.0
        %578 = vmatpush1.msra.mxu0 0.0
        %579 = vmatprep.subr.mxu0 0.0
        %580 = vmatpush1.msra.mxu0 0.0
        %581 = vmatprep.subr.mxu0 0.0
        %582 = vmatpush1.msra.mxu0 0.0
        %583 = vmatprep.subr.mxu0 0.0
        %584 = vmatpush1.msra.mxu0 0.0
        %585 = vmatprep.subr.mxu0 0.0
        %586 = vmatpush1.msra.mxu0 0.0
        %587 = vmatprep.subr.mxu0 0.0
        %588 = vmatpush1.msra.mxu0 0.0
        %589 = vmatprep.subr.mxu0 0.0
        %590 = vmatpush1.msra.mxu0 0.0
        %591 = vmatprep.subr.mxu0 0.0
        %592 = vmatpush1.msra.mxu0 0.0
        %593 = vmatprep.subr.mxu0 0.0
        %594 = vmatpush1.msra.mxu0 0.0
        %595 = vmatprep.mubr.f32.mxu0 0.0
        %v596 = vand.u32 %v239, 4294901760
        %v597 = vsub.f32 %v239, %v596
        %v598 = vand.u32 %v597, 4294901760
        %599 = vmatmul.mubr.f32.gmra.mrb[0].mxu0 %v598
        %v600 = vpop.f32.mrb[0].mxu0
        %v601 = vadd.f32 %v520, %v600
        %v602 = vpop.f32.mrb[0].mxu0
        %603 = vdwg.mxu0
        %604 = vmatprep.subr.mxu0 0.0
        %v605 = vand.u32 %v228, 4294901760
        %v606 = vsub.f32 %v228, %v605
        %v607 = vand.u32 %v606, 4294901760
        %608 = vmatpush1.msra.mxu0 %v607
        %609 = vmatprep.subr.mxu0 0.0
        %v610 = vand.u32 %v229, 4294901760
        %v611 = vsub.f32 %v229, %v610
        %v612 = vand.u32 %v611, 4294901760
        %613 = vmatpush1.msra.mxu0 %v612
        %614 = vmatprep.subr.mxu0 0.0
        %v615 = vand.u32 %v230, 4294901760
        %v616 = vsub.f32 %v230, %v615
        %v617 = vand.u32 %v616, 4294901760
        %618 = vmatpush1.msra.mxu0 %v617
        %619 = vmatprep.subr.mxu0 0.0
        %v620 = vand.u32 %v231, 4294901760
        %v621 = vsub.f32 %v231, %v620
        %v622 = vand.u32 %v621, 4294901760
        %623 = vmatpush1.msra.mxu0 %v622
        %624 = vmatprep.subr.mxu0 0.0
        %v625 = vand.u32 %v232, 4294901760
        %v626 = vsub.f32 %v232, %v625
        %v627 = vand.u32 %v626, 4294901760
        %628 = vmatpush1.msra.mxu0 %v627
        %629 = vmatprep.subr.mxu0 0.0
        %v630 = vand.u32 %v233, 4294901760
        %v631 = vsub.f32 %v233, %v630
        %v632 = vand.u32 %v631, 4294901760
        %633 = vmatpush1.msra.mxu0 %v632
        %634 = vmatprep.subr.mxu0 0.0
        %v635 = vand.u32 %v234, 4294901760
        %v636 = vsub.f32 %v234, %v635
        %v637 = vand.u32 %v636, 4294901760
        %638 = vmatpush1.msra.mxu0 %v637
        %639 = vmatprep.subr.mxu0 0.0
        %v640 = vand.u32 %v235, 4294901760
        %v641 = vsub.f32 %v235, %v640
        %v642 = vand.u32 %v641, 4294901760
        %643 = vmatpush1.msra.mxu0 %v642
        %644 = vmatprep.subr.mxu0 0.0
        %645 = vmatpush1.msra.mxu0 0.0
        %646 = vmatprep.subr.mxu0 0.0
        %647 = vmatpush1.msra.mxu0 0.0
        %648 = vmatprep.subr.mxu0 0.0
        %649 = vmatpush1.msra.mxu0 0.0
        %650 = vmatprep.subr.mxu0 0.0
        %651 = vmatpush1.msra.mxu0 0.0
        %652 = vmatprep.subr.mxu0 0.0
        %653 = vmatpush1.msra.mxu0 0.0
        %654 = vmatprep.subr.mxu0 0.0
        %655 = vmatpush1.msra.mxu0 0.0
        %656 = vmatprep.subr.mxu0 0.0
        %657 = vmatpush1.msra.mxu0 0.0
        %658 = vmatprep.subr.mxu0 0.0
        %659 = vmatpush1.msra.mxu0 0.0
        %660 = vmatprep.subr.mxu0 0.0
        %661 = vmatpush1.msra.mxu0 0.0
        %662 = vmatprep.subr.mxu0 0.0
        %663 = vmatpush1.msra.mxu0 0.0
        %664 = vmatprep.subr.mxu0 0.0
        %665 = vmatpush1.msra.mxu0 0.0
        %666 = vmatprep.subr.mxu0 0.0
        %667 = vmatpush1.msra.mxu0 0.0
        %668 = vmatprep.subr.mxu0 0.0
        %669 = vmatpush1.msra.mxu0 0.0
        %670 = vmatprep.subr.mxu0 0.0
        %671 = vmatpush1.msra.mxu0 0.0
        %672 = vmatprep.subr.mxu0 0.0
        %673 = vmatpush1.msra.mxu0 0.0
        %674 = vmatprep.subr.mxu0 0.0
        %675 = vmatpush1.msra.mxu0 0.0
        %676 = vmatprep.subr.mxu0 0.0
        %677 = vmatpush1.msra.mxu0 0.0
        %678 = vmatprep.subr.mxu0 0.0
        %679 = vmatpush1.msra.mxu0 0.0
        %680 = vmatprep.subr.mxu0 0.0
        %681 = vmatpush1.msra.mxu0 0.0
        %682 = vmatprep.subr.mxu0 0.0
        %683 = vmatpush1.msra.mxu0 0.0
        %684 = vmatprep.subr.mxu0 0.0
        %685 = vmatpush1.msra.mxu0 0.0
        %686 = vmatprep.subr.mxu0 0.0
        %687 = vmatpush1.msra.mxu0 0.0
        %688 = vmatprep.subr.mxu0 0.0
        %689 = vmatpush1.msra.mxu0 0.0
        %690 = vmatprep.subr.mxu0 0.0
        %691 = vmatpush1.msra.mxu0 0.0
        %692 = vmatprep.mubr.f32.mxu0 0.0
        %v693 = vand.u32 %v239, 4294901760
        %694 = vmatmul.mubr.f32.gmra.mrb[0].mxu0 %v693
        %v695 = vpop.f32.mrb[0].mxu0
        %v696 = vadd.f32 %v601, %v695
        %v697 = vpop.f32.mrb[0].mxu0
        %698 = vdwg.mxu0
        %699 = vmatprep.subr.mxu0 0.0
        %v700 = vand.u32 %v228, 4294901760
        %701 = vmatpush1.msra.mxu0 %v700
        %702 = vmatprep.subr.mxu0 0.0
        %v703 = vand.u32 %v229, 4294901760
        %704 = vmatpush1.msra.mxu0 %v703
        %705 = vmatprep.subr.mxu0 0.0
        %v706 = vand.u32 %v230, 4294901760
        %707 = vmatpush1.msra.mxu0 %v706
        %708 = vmatprep.subr.mxu0 0.0
        %v709 = vand.u32 %v231, 4294901760
        %710 = vmatpush1.msra.mxu0 %v709
        %711 = vmatprep.subr.mxu0 0.0
        %v712 = vand.u32 %v232, 4294901760
        %713 = vmatpush1.msra.mxu0 %v712
        %714 = vmatprep.subr.mxu0 0.0
        %v715 = vand.u32 %v233, 4294901760
        %716 = vmatpush1.msra.mxu0 %v715
        %717 = vmatprep.subr.mxu0 0.0
        %v718 = vand.u32 %v234, 4294901760
        %719 = vmatpush1.msra.mxu0 %v718
        %720 = vmatprep.subr.mxu0 0.0
        %v721 = vand.u32 %v235, 4294901760
        %722 = vmatpush1.msra.mxu0 %v721
        %723 = vmatprep.subr.mxu0 0.0
        %724 = vmatpush1.msra.mxu0 0.0
        %725 = vmatprep.subr.mxu0 0.0
        %726 = vmatpush1.msra.mxu0 0.0
        %727 = vmatprep.subr.mxu0 0.0
        %728 = vmatpush1.msra.mxu0 0.0
        %729 = vmatprep.subr.mxu0 0.0
        %730 = vmatpush1.msra.mxu0 0.0
        %731 = vmatprep.subr.mxu0 0.0
        %732 = vmatpush1.msra.mxu0 0.0
        %733 = vmatprep.subr.mxu0 0.0
        %734 = vmatpush1.msra.mxu0 0.0
        %735 = vmatprep.subr.mxu0 0.0
        %736 = vmatpush1.msra.mxu0 0.0
        %737 = vmatprep.subr.mxu0 0.0
        %738 = vmatpush1.msra.mxu0 0.0
        %739 = vmatprep.subr.mxu0 0.0
        %740 = vmatpush1.msra.mxu0 0.0
        %741 = vmatprep.subr.mxu0 0.0
        %742 = vmatpush1.msra.mxu0 0.0
        %743 = vmatprep.subr.mxu0 0.0
        %744 = vmatpush1.msra.mxu0 0.0
        %745 = vmatprep.subr.mxu0 0.0
        %746 = vmatpush1.msra.mxu0 0.0
        %747 = vmatprep.subr.mxu0 0.0
        %748 = vmatpush1.msra.mxu0 0.0
        %749 = vmatprep.subr.mxu0 0.0
        %750 = vmatpush1.msra.mxu0 0.0
        %751 = vmatprep.subr.mxu0 0.0
        %752 = vmatpush1.msra.mxu0 0.0
        %753 = vmatprep.subr.mxu0 0.0
        %754 = vmatpush1.msra.mxu0 0.0
        %755 = vmatprep.subr.mxu0 0.0
        %756 = vmatpush1.msra.mxu0 0.0
        %757 = vmatprep.subr.mxu0 0.0
        %758 = vmatpush1.msra.mxu0 0.0
        %759 = vmatprep.subr.mxu0 0.0
        %760 = vmatpush1.msra.mxu0 0.0
        %761 = vmatprep.subr.mxu0 0.0
        %762 = vmatpush1.msra.mxu0 0.0
        %763 = vmatprep.subr.mxu0 0.0
        %764 = vmatpush1.msra.mxu0 0.0
        %765 = vmatprep.subr.mxu0 0.0
        %766 = vmatpush1.msra.mxu0 0.0
        %767 = vmatprep.subr.mxu0 0.0
        %768 = vmatpush1.msra.mxu0 0.0
        %769 = vmatprep.subr.mxu0 0.0
        %770 = vmatpush1.msra.mxu0 0.0
        %771 = vmatprep.mubr.f32.mxu0 0.0
        %v772 = vand.u32 %v239, 4294901760
        %773 = vmatmul.mubr.f32.gmra.mrb[0].mxu0 %v772
        %v774 = vpop.f32.mrb[0].mxu0
        %v775 = vadd.f32 %v696, %v774
        %v776 = vpop.f32.mrb[0].mxu0
        %777 = vdwg.mxu0
        %vm778 = vcmask 261120
        %v779 = vsel %vm778, %v775, 0.0
        %780 = vadd.xlane.f32.xlu0 %v779
        %v781 = vpop.xlane.xlu0 %780
        %v782 = vrcp.pop 32.0
        %v783 = vmul.f32 %v781, %v782
        %v784 = vsub.f32 %v775, %v783
        %v785 = vmul.f32 %v784, %v784
        %v786 = vsel %vm778, %v785, 0.0
        %787 = vadd.xlane.f32.xlu0 %v786
        %v788 = vpop.xlane.xlu0 %787
        %v789 = vmul.f32 %v788, 0.032258064
        %v790 = vrsqrt.pop %v789
        %v791 = vmul.f32 %v789, %v790
        %vm792 = vcmp.eq.f32.partialorder %v789, inf
        %v793 = vsel %vm792, %v789, %v791
        %vm794 = vcmp.eq.f32.partialorder %v789, 0.0
        %v795 = vand.u32 %v789, 2147483648
        %v796 = vsel %vm794, %v795, %v793
        %v797 = vadd.f32 %v796, 1e-06
        %v798 = vrcp.pop %v797
        %v799 = vld [vmem:[%s3] sm:$0x1]
        %v800 = vmul.f32 %v784, %v798
        %v802 = vlaneseq
        %v803 = vshrl.u32 %v802, 7
        %v804 = vsub.s32 0, %v803
        %v805 = vrot.slane %v799, %v804
        %v807 = vmul.f32 %v805, %v800
        %v808 = vld [vmem:[%s4] sm:$0x1]
        %v810 = vlaneseq
        %v811 = vshrl.u32 %v810, 7
        %v812 = vsub.s32 0, %v811
        %v813 = vrot.slane %v808, %v812
        %v815 = vadd.f32 %v807, %v813
        %816 = vst.msk [vmem:[%s215] sm:$0xff] %vm778, %v815
        %s817 = sand.u32 %s137, 1
        %s818 = scalar_lea.sflag [#allocation3], %s817
        %s819 = sand.u32 %s137, 1
        %s820 = smul.addr %s819, 8
        %s821 = scalar_lea.vmem [#allocation2], %s820
        // Predicated region
        $region41: #{tpu_custom_call.1} parent=39 // pred_check
          %p822 = pneg %p147
        $region42: #{tpu_custom_call.1} parent=39 // pred_check_branch
          %824 = sbr.rel (%p822) target = $region44
        $region43: #{tpu_custom_call.1} parent=39 // pred_region
          %s826 = ssub.s32 128, 128
          %827 = vsyncadd %s818, %s826
          %s828 = smul.addr %s19, 128
          %s829 = scalar_lea.hbm %s5, %s828
          %s831 = sshll.u32 %s821, 4
          %s832 = int_to_ptr.vmem [resolvable:$true] %s831
          %834 = dma.vmem_to_hbm [thread:$0]  %s832, 128, %s829, %s818
        $region44: #{tpu_custom_call.1} parent=39 // pred_fallthru
          _
      $region40: #{tpu_custom_call.1} parent=5 // pred_fallthru
        _
      %p835 = scmp.le.s32.totalorder 2, %s14
      // Predicated region
      $region45: #{tpu_custom_call.1} parent=5 // pred_check
        %p836 = pneg %p835
      $region46: #{tpu_custom_call.1} parent=5 // pred_check_branch
        %838 = sbr.rel (%p836) target = $region48
      $region47: #{tpu_custom_call.1} parent=5 // pred_region
        %s839 = ssub.s32 %s14, 2
        // Predicated region
        $region49: #{tpu_custom_call.1} parent=47 // pred_check
          %p840 = pneg %p153
        $region50: #{tpu_custom_call.1} parent=47 // pred_check_branch
          %842 = sbr.rel (%p840) target = $region52
        $region51: #{tpu_custom_call.1} parent=47 // pred_region
          %s843 = sand.u32 %s138, 1
          %s844 = scalar_lea.sflag [#allocation3], %s843
          %s845 = sand.u32 %s138, 1
          %s846 = smul.addr %s845, 8
          %s847 = scalar_lea.vmem [#allocation2], %s846
          %848 = dma.done %s844, 128
        $region52: #{tpu_custom_call.1} parent=47 // pred_fallthru
          _
      $region48: #{tpu_custom_call.1} parent=5 // pred_fallthru
        _
    $region6: #{tpu_custom_call.1} parent=1 // loop_footer
      %s18 = sadd.s32 1, %s14
    $region7: #{tpu_custom_call.1} parent=1 // loop_footer_branch
      %13 = sbr.rel target = $region3
    $region8: #{tpu_custom_call.1} parent=1 // loop_exit
      _
    %849 = vsyncpa [#allocation3], 1
    %s850 = scalar_lea.sflag [#allocation3], 1
    %851 = vsyncpa %s850, 1

</llo_original>
